<compile_context>
chip_gen: v7x
topology: tpu7x:2x2x1
jax: 0.10.0
libtpu: 0.0.40
codegen_flags: <defaults>
</compile_context>

<pallas_src>
import jax
import jax.numpy as jnp
from jax.experimental import pallas as pl
from jax.experimental.pallas import tpu as pltpu

# Fixed VG-50 frequency ranking from the reference implementation (51 entries).
REL_RANK_ID = (0, 8, 44, 34, 28, 30, 17, 16, 10, 32, 31, 22, 40, 26, 23, 45,
               20, 36, 49, 18, 2, 9, 3, 15, 27, 35, 48, 39, 41, 6, 4, 1, 47,
               19, 33, 37, 43, 25, 21, 42, 12, 14, 38, 11, 46, 50, 24, 29, 5,
               13, 7)

C = 51                      # number of predicate classes
TOPK = 5
NEG_SENTINEL = -1e30        # assumes no real logit is <= -1e30 (documented precondition)
KEY_SCALE = 64.0            # rank fits in 6 bits -> key = class*64 + rank
KEY_BIG = 65536.0           # larger than any valid key (max 50*64 + 63)


def _round_up(x, m):
    return ((x + m - 1) // m) * m


def _num_tensorcores():
    """Best-effort TC-per-device count (2 on v7x-class chips, else 1)."""
    try:
        kind = jax.devices()[0].device_kind.lower()
        if "v7" in kind or "7x" in kind:
            return 2
    except Exception:
        pass
    return 1


def _pick_tile(n, tn):
    """Lane-tile size: as big as requested (multiple of 128), clamped to N.

    Only on 2-TC chips (v7x) do we additionally cap the tile so the grid has
    >= 4 steps (never below 512 lanes) — on 1-TC chips that clamp would only
    add per-step overhead.
    """
    n_lanes = _round_up(max(int(n), 1), 128)
    tn_eff = max(128, min(_round_up(int(tn), 128), n_lanes))
    if _num_tensorcores() > 1 and n_lanes >= 4 * 512:
        tn_eff = min(tn_eff, max(512, _round_up(pl.cdiv(int(n), 4), 128)))
    return tn_eff


def _reassignment_kernel(key_ref, rev_ref, dists_ref, out_ref):
    """key_ref/rev_ref: (C, 1) f32.  dists_ref/out_ref: (C, TN) f32.

    key_ref[r] = r*64 + rel_rank_id[r]
    rev_ref[r] = key of class (C-1-r)  (used for the reverse-class scatter)
    """
    x = dists_ref[...]                                     # (C, TN)
    c, tn = x.shape

    key_base = jnp.broadcast_to(key_ref[...], (c, tn))     # (C, TN) f32, hoisted once

    # global_rel_dists_51: class-0 logit forced to -100.  Class 0 is the only
    # class whose packed key is < KEY_SCALE (it is exactly 0.0), so the key
    # table doubles as the mask — no iota / int32 temporary needed.
    work = jnp.where(key_base < KEY_SCALE, jnp.float32(-100.0), x)

    # ---- fused iterative top-5: one sublane max + one packed-key sublane min
    #      per step (rank gather fused into the key; 10 reductions total). ----
    scores, keys = [], []
    for _ in range(TOPK):
        m = jnp.max(work, axis=0, keepdims=True)                       # (1, TN)
        key = jnp.where(work == m, key_base, jnp.float32(KEY_BIG))     # (C, TN)
        kmin = jnp.min(key, axis=0, keepdims=True)                     # (1, TN)
        scores.append(m)
        keys.append(kmin)
        # Eliminate the winner (keys are unique per class -> exactly one hit).
        work = jnp.where(key == kmin, jnp.float32(NEG_SENTINEL), work)

    # rank_k = key_k mod 64  (all quantities are small exact integers in f32).
    ranks = []
    for k in range(TOPK):
        q = jnp.floor(keys[k] * (1.0 / KEY_SCALE))
        ranks.append(keys[k] - KEY_SCALE * q)

    s1 = scores[0]
    one = jnp.ones_like(s1)
    zero = jnp.zeros_like(s1)
    # Exact reciprocals (approx=False) so results match the reference division
    # to ~1e-5; flip to approx=True (EUP slot) only if downstream tolerates 1e-3.
    inv_s1 = pl.reciprocal(s1)
    # relevant[0] == reassign[0] == 1.0 exactly (s1/s1); hardcode them.
    relevant = [one] + [scores[k] * inv_s1 for k in range(1, TOPK)]
    reassign = [one] + [s1 * pl.reciprocal(scores[k]) for k in range(1, TOPK)]

    # ---- cascaded relative-rank gating (matches the PyTorch order exactly). ----
    keep = [None] * TOPK
    relrank = jnp.maximum(ranks[0], ranks[1])
    keep[0] = jnp.where(ranks[0] >= relrank, reassign[0], zero)
    keep[1] = jnp.where(ranks[1] >= relrank, reassign[1], zero)
    for k in range(2, TOPK):
        relrank = jnp.maximum(relrank, ranks[k])
        keep[k] = jnp.where(ranks[k] >= relrank, reassign[k], zero)

    # Relevance threshold (relevant[0] == 1.0 is never < 0.3).
    for k in range(1, TOPK):
        keep[k] = jnp.where(relevant[k] < 0.3, zero, keep[k])

    # ---- scatter: output row r holds the value for class (C-1-r).
    # rev_key[r] is the packed key of class (C-1-r), so keys[k]==rev_key[r]
    # <=> id_k == C-1-r (keys are unique per class).  The 5 winner masks are
    # disjoint -> chained selects (no zeros init, no adds). ----
    rev_key = jnp.broadcast_to(rev_ref[...], (c, tn))      # (C, TN) f32
    out = jnp.where(keys[0] == rev_key, keep[0], jnp.float32(0.0))
    for k in range(1, TOPK):
        out = jnp.where(keys[k] == rev_key, keep[k], out)
    out_ref[...] = out


def _key_tables():
    # key[r] = r*64 + rank[r];  rev[r] = key[C-1-r].  Tiny constant-index
    # inputs so the pipeline fetches them once.
    rank = jnp.asarray(REL_RANK_ID, dtype=jnp.float32)
    cls = jnp.arange(C, dtype=jnp.float32)
    key_tab = (cls * KEY_SCALE + rank).reshape(C, 1)
    rev_tab = key_tab[::-1, :]
    return key_tab, rev_tab


def generate_reassignment_labels_transposed(global_rel_dists,
                                            predictor="MotifPredictor",
                                            tn=4096):
    """Runs the kernel and returns its native (C, n_pad) output plus n.

    Fused consumers should use this entry point and read the class-major
    layout directly (column j = proposal j, row r = class C-1-r), avoiding the
    host back-transpose entirely (review option (b)).
    """
    # TODO(synk): 'CausalAnalysisPredictor' (TDE) branch not implemented here;
    #             this kernel covers the default re-assignment branch.
    assert predictor != "CausalAnalysisPredictor"
    n, c = global_rel_dists.shape
    assert c == C, f"expected {C} predicate classes, got {c}"

    tn_eff = _pick_tile(n, tn)
    grid = pl.cdiv(n, tn_eff)
    n_pad = grid * tn_eff

    key_tab, rev_tab = _key_tables()

    xt = jnp.transpose(global_rel_dists.astype(jnp.float32))    # (C, N)
    if n_pad != n:
        # Benign pad value (1.0): padded lanes then compute finite garbage
        # (s1 = 1) instead of reciprocal(0) -> NaN; they are sliced away below.
        xt = jnp.pad(xt, ((0, 0), (0, n_pad - n)), constant_values=1.0)

    out_t = pl.pallas_call(
        _reassignment_kernel,
        out_shape=jax.ShapeDtypeStruct((C, n_pad), jnp.float32),
        grid_spec=pltpu.PrefetchScalarGridSpec(
            num_scalar_prefetch=0,
            grid=(grid,),
            in_specs=[
                pl.BlockSpec((C, 1), lambda i: (0, 0)),        # packed keys
                pl.BlockSpec((C, 1), lambda i: (0, 0)),        # reversed keys
                pl.BlockSpec((C, tn_eff), lambda i: (0, i)),   # logits tile
            ],
            out_specs=pl.BlockSpec((C, tn_eff), lambda i: (0, i)),
        ),
        compiler_params=pltpu.CompilerParams(
            dimension_semantics=("parallel",),
            vmem_limit_bytes=32 * 1024 * 1024),
    )(key_tab, rev_tab, xt)
    return out_t, n


def generate_reassignment_labels(global_rel_dists, rel_labels=None,
                                 predictor="MotifPredictor", tn=4096):
    """Module-exact wrapper: returns the (N, C) reassignment labels."""
    out_t, n = generate_reassignment_labels_transposed(
        global_rel_dists, predictor=predictor, tn=tn)
    # Slice first (less data), then transpose back to the module's (N, C).
    return jnp.transpose(out_t[:, :n])


# ---------------- pure-JAX reference (mirrors the PyTorch code) ----------------
def ref_forward(global_rel_dists, rel_rank_id):
    n, c = global_rel_dists.shape
    g51 = jnp.concatenate(
        [-100.0 * jnp.ones((n, 1), jnp.float32), global_rel_dists[:, 1:]], axis=-1)
    ids = jnp.argsort(-g51, axis=-1)
    scores = jnp.take_along_axis(g51, ids, axis=-1)
    top5 = scores[:, 0:5]
    s1 = top5[:, 0:1]
    relevant = top5 / s1
    reassign = s1 / top5
    ranks = rel_rank_id[ids[:, 0:5]]
    relrank = jnp.maximum(ranks[:, 0:1], ranks[:, 1:2])
    k1 = jnp.where(ranks[:, 0:1] >= relrank, reassign[:, 0:1], 0.0)
    k2 = jnp.where(ranks[:, 1:2] >= relrank, reassign[:, 1:2], 0.0)
    relrank = jnp.maximum(relrank, ranks[:, 2:3])
    k3 = jnp.where(ranks[:, 2:3] >= relrank, reassign[:, 2:3], 0.0)
    relrank = jnp.maximum(relrank, ranks[:, 3:4])
    k4 = jnp.where(ranks[:, 3:4] >= relrank, reassign[:, 3:4], 0.0)
    relrank = jnp.maximum(relrank, ranks[:, 4:5])
    k5 = jnp.where(ranks[:, 4:5] >= relrank, reassign[:, 4:5], 0.0)
    labels = jnp.concatenate([k1, k2, k3, k4, k5], axis=-1)
    labels = jnp.where(relevant < 0.3, 0.0, labels)
    labels = jnp.concatenate([labels, jnp.zeros((n, c - 5), jnp.float32)], axis=1)
    restore = jnp.argsort(-ids, axis=1)
    return jnp.take_along_axis(labels, restore, axis=1)


if __name__ == "__main__":
    key = jax.random.PRNGKey(0)
    rank_arr = jnp.asarray(REL_RANK_ID, dtype=jnp.int32)
    k0, k1, k2 = jax.random.split(key, 3)

    # small shape consistent with the module: N relation proposals x 51 classes
    N = 16
    global_rel_dists = jax.random.normal(k0, (N, C), dtype=jnp.float32)
    rel_labels = jax.random.randint(k1, (N,), 0, C, dtype=jnp.int32)  # unused here

    out = jax.block_until_ready(
        generate_reassignment_labels(global_rel_dists, rel_labels))
    ref = ref_forward(global_rel_dists, rank_arr)
    assert out.shape == (N, C) and out.dtype == jnp.float32
    assert jnp.allclose(out, ref, atol=1e-5, rtol=1e-5), "mismatch vs reference"

    # second check: exercises the lane-padding path (N not a multiple of 128)
    N2 = 300
    x2 = jax.random.normal(k2, (N2, C), dtype=jnp.float32)
    out2 = jax.block_until_ready(generate_reassignment_labels(x2, None))
    ref2 = ref_forward(x2, rank_arr)
    assert jnp.allclose(out2, ref2, atol=1e-5, rtol=1e-5), "mismatch (padded grid)"

    # third: the transposed (fused-consumer) entry point agrees as well
    out_t, n_valid = generate_reassignment_labels_transposed(x2)
    out3 = jax.block_until_ready(jnp.transpose(out_t[:, :n_valid]))
    assert jnp.allclose(out3, ref2, atol=1e-5, rtol=1e-5), "mismatch (transposed path)"

    print("KERNEL_OK")
</pallas_src>

<mosaic_0001>
module attributes {stable_mosaic.version = 11 : i64} {
  func.func @_reassignment_kernel(%arg0: i32, %arg1: memref<51x1xf32, #tpu.memory_space<vmem>>, %arg2: memref<51x1xf32, #tpu.memory_space<vmem>>, %arg3: memref<51x128xf32, #tpu.memory_space<vmem>>, %arg4: memref<51x128xf32, #tpu.memory_space<vmem>>) attributes {dimension_semantics = [#tpu.dimension_semantics<parallel>], iteration_bounds = array<i64: 1>, scalar_prefetch = 0 : i64, scratch_operands = 0 : i64, tpu.core_type = #tpu.core_type<tc>, window_params = [{pipeline_mode = #tpu.pipeline_mode<synchronous>, transform_indices = @transform_0, window_bounds = array<i64: 51, 1>}, {pipeline_mode = #tpu.pipeline_mode<synchronous>, transform_indices = @transform_1, window_bounds = array<i64: 51, 1>}, {transform_indices = @transform_2, window_bounds = array<i64: 51, 128>}, {transform_indices = @transform_3, window_bounds = array<i64: 51, 128>}]} {
    %c0 = arith.constant 0 : index
    %c0_0 = arith.constant 0 : index
    %0 = vector.load %arg3[%c0, %c0_0] : memref<51x128xf32, #tpu.memory_space<vmem>>, vector<51x128xf32>
    %c0_1 = arith.constant 0 : index
    %c0_2 = arith.constant 0 : index
    %1 = vector.load %arg1[%c0_1, %c0_2] : memref<51x1xf32, #tpu.memory_space<vmem>>, vector<51x1xf32>
    %2 = vector.shape_cast %1 : vector<51x1xf32> to vector<51x1xf32>
    %3 = vector.broadcast %2 : vector<51x1xf32> to vector<51x128xf32>
    %cst = arith.constant 6.400000e+01 : f32
    %4 = vector.broadcast %cst : f32 to vector<51x128xf32>
    %5 = arith.cmpf olt, %3, %4 : vector<51x128xf32>
    %cst_3 = arith.constant -1.000000e+02 : f32
    %6 = vector.broadcast %cst_3 : f32 to vector<51x128xf32>
    %7 = arith.select %5, %6, %0 : vector<51x128xi1>, vector<51x128xf32>
    %cst_4 = arith.constant dense<0xFF800000> : vector<128xf32>
    %8 = vector.multi_reduction <maximumf>, %7, %cst_4 [0] : vector<51x128xf32> to vector<128xf32>
    %9 = vector.shape_cast %8 : vector<128xf32> to vector<1x128xf32>
    %10 = vector.broadcast %9 : vector<1x128xf32> to vector<51x128xf32>
    %11 = arith.cmpf oeq, %7, %10 : vector<51x128xf32>
    %cst_5 = arith.constant 6.553600e+04 : f32
    %12 = vector.broadcast %cst_5 : f32 to vector<51x128xf32>
    %13 = arith.select %11, %3, %12 : vector<51x128xi1>, vector<51x128xf32>
    %cst_6 = arith.constant dense<0x7F800000> : vector<128xf32>
    %14 = vector.multi_reduction <minimumf>, %13, %cst_6 [0] : vector<51x128xf32> to vector<128xf32>
    %15 = vector.shape_cast %14 : vector<128xf32> to vector<1x128xf32>
    %16 = vector.broadcast %15 : vector<1x128xf32> to vector<51x128xf32>
    %17 = arith.cmpf oeq, %13, %16 : vector<51x128xf32>
    %cst_7 = arith.constant -1.000000e+30 : f32
    %18 = vector.broadcast %cst_7 : f32 to vector<51x128xf32>
    %19 = arith.select %17, %18, %7 : vector<51x128xi1>, vector<51x128xf32>
    %cst_8 = arith.constant dense<0xFF800000> : vector<128xf32>
    %20 = vector.multi_reduction <maximumf>, %19, %cst_8 [0] : vector<51x128xf32> to vector<128xf32>
    %21 = vector.shape_cast %20 : vector<128xf32> to vector<1x128xf32>
    %22 = vector.broadcast %21 : vector<1x128xf32> to vector<51x128xf32>
    %23 = arith.cmpf oeq, %19, %22 : vector<51x128xf32>
    %cst_9 = arith.constant 6.553600e+04 : f32
    %24 = vector.broadcast %cst_9 : f32 to vector<51x128xf32>
    %25 = arith.select %23, %3, %24 : vector<51x128xi1>, vector<51x128xf32>
    %cst_10 = arith.constant dense<0x7F800000> : vector<128xf32>
    %26 = vector.multi_reduction <minimumf>, %25, %cst_10 [0] : vector<51x128xf32> to vector<128xf32>
    %27 = vector.shape_cast %26 : vector<128xf32> to vector<1x128xf32>
    %28 = vector.broadcast %27 : vector<1x128xf32> to vector<51x128xf32>
    %29 = arith.cmpf oeq, %25, %28 : vector<51x128xf32>
    %cst_11 = arith.constant -1.000000e+30 : f32
    %30 = vector.broadcast %cst_11 : f32 to vector<51x128xf32>
    %31 = arith.select %29, %30, %19 : vector<51x128xi1>, vector<51x128xf32>
    %cst_12 = arith.constant dense<0xFF800000> : vector<128xf32>
    %32 = vector.multi_reduction <maximumf>, %31, %cst_12 [0] : vector<51x128xf32> to vector<128xf32>
    %33 = vector.shape_cast %32 : vector<128xf32> to vector<1x128xf32>
    %34 = vector.broadcast %33 : vector<1x128xf32> to vector<51x128xf32>
    %35 = arith.cmpf oeq, %31, %34 : vector<51x128xf32>
    %cst_13 = arith.constant 6.553600e+04 : f32
    %36 = vector.broadcast %cst_13 : f32 to vector<51x128xf32>
    %37 = arith.select %35, %3, %36 : vector<51x128xi1>, vector<51x128xf32>
    %cst_14 = arith.constant dense<0x7F800000> : vector<128xf32>
    %38 = vector.multi_reduction <minimumf>, %37, %cst_14 [0] : vector<51x128xf32> to vector<128xf32>
    %39 = vector.shape_cast %38 : vector<128xf32> to vector<1x128xf32>
    %40 = vector.broadcast %39 : vector<1x128xf32> to vector<51x128xf32>
    %41 = arith.cmpf oeq, %37, %40 : vector<51x128xf32>
    %cst_15 = arith.constant -1.000000e+30 : f32
    %42 = vector.broadcast %cst_15 : f32 to vector<51x128xf32>
    %43 = arith.select %41, %42, %31 : vector<51x128xi1>, vector<51x128xf32>
    %cst_16 = arith.constant dense<0xFF800000> : vector<128xf32>
    %44 = vector.multi_reduction <maximumf>, %43, %cst_16 [0] : vector<51x128xf32> to vector<128xf32>
    %45 = vector.shape_cast %44 : vector<128xf32> to vector<1x128xf32>
    %46 = vector.broadcast %45 : vector<1x128xf32> to vector<51x128xf32>
    %47 = arith.cmpf oeq, %43, %46 : vector<51x128xf32>
    %cst_17 = arith.constant 6.553600e+04 : f32
    %48 = vector.broadcast %cst_17 : f32 to vector<51x128xf32>
    %49 = arith.select %47, %3, %48 : vector<51x128xi1>, vector<51x128xf32>
    %cst_18 = arith.constant dense<0x7F800000> : vector<128xf32>
    %50 = vector.multi_reduction <minimumf>, %49, %cst_18 [0] : vector<51x128xf32> to vector<128xf32>
    %51 = vector.shape_cast %50 : vector<128xf32> to vector<1x128xf32>
    %52 = vector.broadcast %51 : vector<1x128xf32> to vector<51x128xf32>
    %53 = arith.cmpf oeq, %49, %52 : vector<51x128xf32>
    %cst_19 = arith.constant -1.000000e+30 : f32
    %54 = vector.broadcast %cst_19 : f32 to vector<51x128xf32>
    %55 = arith.select %53, %54, %43 : vector<51x128xi1>, vector<51x128xf32>
    %cst_20 = arith.constant dense<0xFF800000> : vector<128xf32>
    %56 = vector.multi_reduction <maximumf>, %55, %cst_20 [0] : vector<51x128xf32> to vector<128xf32>
    %57 = vector.shape_cast %56 : vector<128xf32> to vector<1x128xf32>
    %58 = vector.broadcast %57 : vector<1x128xf32> to vector<51x128xf32>
    %59 = arith.cmpf oeq, %55, %58 : vector<51x128xf32>
    %cst_21 = arith.constant 6.553600e+04 : f32
    %60 = vector.broadcast %cst_21 : f32 to vector<51x128xf32>
    %61 = arith.select %59, %3, %60 : vector<51x128xi1>, vector<51x128xf32>
    %cst_22 = arith.constant dense<0x7F800000> : vector<128xf32>
    %62 = vector.multi_reduction <minimumf>, %61, %cst_22 [0] : vector<51x128xf32> to vector<128xf32>
    %63 = vector.shape_cast %62 : vector<128xf32> to vector<1x128xf32>
    %cst_23 = arith.constant 1.562500e-02 : f32
    %64 = vector.broadcast %cst_23 : f32 to vector<1x128xf32>
    %65 = arith.mulf %15, %64 : vector<1x128xf32>
    %66 = math.floor %65 : vector<1x128xf32>
    %cst_24 = arith.constant 6.400000e+01 : f32
    %67 = vector.broadcast %cst_24 : f32 to vector<1x128xf32>
    %68 = arith.mulf %67, %66 : vector<1x128xf32>
    %69 = arith.subf %15, %68 : vector<1x128xf32>
    %cst_25 = arith.constant 1.562500e-02 : f32
    %70 = vector.broadcast %cst_25 : f32 to vector<1x128xf32>
    %71 = arith.mulf %27, %70 : vector<1x128xf32>
    %72 = math.floor %71 : vector<1x128xf32>
    %cst_26 = arith.constant 6.400000e+01 : f32
    %73 = vector.broadcast %cst_26 : f32 to vector<1x128xf32>
    %74 = arith.mulf %73, %72 : vector<1x128xf32>
    %75 = arith.subf %27, %74 : vector<1x128xf32>
    %cst_27 = arith.constant 1.562500e-02 : f32
    %76 = vector.broadcast %cst_27 : f32 to vector<1x128xf32>
    %77 = arith.mulf %39, %76 : vector<1x128xf32>
    %78 = math.floor %77 : vector<1x128xf32>
    %cst_28 = arith.constant 6.400000e+01 : f32
    %79 = vector.broadcast %cst_28 : f32 to vector<1x128xf32>
    %80 = arith.mulf %79, %78 : vector<1x128xf32>
    %81 = arith.subf %39, %80 : vector<1x128xf32>
    %cst_29 = arith.constant 1.562500e-02 : f32
    %82 = vector.broadcast %cst_29 : f32 to vector<1x128xf32>
    %83 = arith.mulf %51, %82 : vector<1x128xf32>
    %84 = math.floor %83 : vector<1x128xf32>
    %cst_30 = arith.constant 6.400000e+01 : f32
    %85 = vector.broadcast %cst_30 : f32 to vector<1x128xf32>
    %86 = arith.mulf %85, %84 : vector<1x128xf32>
    %87 = arith.subf %51, %86 : vector<1x128xf32>
    %cst_31 = arith.constant 1.562500e-02 : f32
    %88 = vector.broadcast %cst_31 : f32 to vector<1x128xf32>
    %89 = arith.mulf %63, %88 : vector<1x128xf32>
    %90 = math.floor %89 : vector<1x128xf32>
    %cst_32 = arith.constant 6.400000e+01 : f32
    %91 = vector.broadcast %cst_32 : f32 to vector<1x128xf32>
    %92 = arith.mulf %91, %90 : vector<1x128xf32>
    %93 = arith.subf %63, %92 : vector<1x128xf32>
    %cst_33 = arith.constant 1.000000e+00 : f32
    %94 = vector.broadcast %cst_33 : f32 to vector<1x128xf32>
    %cst_34 = arith.constant 0.000000e+00 : f32
    %95 = vector.broadcast %cst_34 : f32 to vector<1x128xf32>
    %96 = tpu.reciprocal %9 : vector<1x128xf32> -> vector<1x128xf32>
    %97 = arith.mulf %21, %96 : vector<1x128xf32>
    %98 = arith.mulf %33, %96 : vector<1x128xf32>
    %99 = arith.mulf %45, %96 : vector<1x128xf32>
    %100 = arith.mulf %57, %96 : vector<1x128xf32>
    %101 = tpu.reciprocal %21 : vector<1x128xf32> -> vector<1x128xf32>
    %102 = arith.mulf %9, %101 : vector<1x128xf32>
    %103 = tpu.reciprocal %33 : vector<1x128xf32> -> vector<1x128xf32>
    %104 = arith.mulf %9, %103 : vector<1x128xf32>
    %105 = tpu.reciprocal %45 : vector<1x128xf32> -> vector<1x128xf32>
    %106 = arith.mulf %9, %105 : vector<1x128xf32>
    %107 = tpu.reciprocal %57 : vector<1x128xf32> -> vector<1x128xf32>
    %108 = arith.mulf %9, %107 : vector<1x128xf32>
    %109 = arith.maximumf %69, %75 : vector<1x128xf32>
    %110 = arith.cmpf oge, %69, %109 : vector<1x128xf32>
    %111 = arith.select %110, %94, %95 : vector<1x128xi1>, vector<1x128xf32>
    %112 = arith.cmpf oge, %75, %109 : vector<1x128xf32>
    %113 = arith.select %112, %102, %95 : vector<1x128xi1>, vector<1x128xf32>
    %114 = arith.maximumf %109, %81 : vector<1x128xf32>
    %115 = arith.cmpf oge, %81, %114 : vector<1x128xf32>
    %116 = arith.select %115, %104, %95 : vector<1x128xi1>, vector<1x128xf32>
    %117 = arith.maximumf %114, %87 : vector<1x128xf32>
    %118 = arith.cmpf oge, %87, %117 : vector<1x128xf32>
    %119 = arith.select %118, %106, %95 : vector<1x128xi1>, vector<1x128xf32>
    %120 = arith.maximumf %117, %93 : vector<1x128xf32>
    %121 = arith.cmpf oge, %93, %120 : vector<1x128xf32>
    %122 = arith.select %121, %108, %95 : vector<1x128xi1>, vector<1x128xf32>
    %cst_35 = arith.constant 3.000000e-01 : f32
    %123 = vector.broadcast %cst_35 : f32 to vector<1x128xf32>
    %124 = arith.cmpf olt, %97, %123 : vector<1x128xf32>
    %125 = arith.select %124, %95, %113 : vector<1x128xi1>, vector<1x128xf32>
    %cst_36 = arith.constant 3.000000e-01 : f32
    %126 = vector.broadcast %cst_36 : f32 to vector<1x128xf32>
    %127 = arith.cmpf olt, %98, %126 : vector<1x128xf32>
    %128 = arith.select %127, %95, %116 : vector<1x128xi1>, vector<1x128xf32>
    %cst_37 = arith.constant 3.000000e-01 : f32
    %129 = vector.broadcast %cst_37 : f32 to vector<1x128xf32>
    %130 = arith.cmpf olt, %99, %129 : vector<1x128xf32>
    %131 = arith.select %130, %95, %119 : vector<1x128xi1>, vector<1x128xf32>
    %cst_38 = arith.constant 3.000000e-01 : f32
    %132 = vector.broadcast %cst_38 : f32 to vector<1x128xf32>
    %133 = arith.cmpf olt, %100, %132 : vector<1x128xf32>
    %134 = arith.select %133, %95, %122 : vector<1x128xi1>, vector<1x128xf32>
    %c0_39 = arith.constant 0 : index
    %c0_40 = arith.constant 0 : index
    %135 = vector.load %arg2[%c0_39, %c0_40] : memref<51x1xf32, #tpu.memory_space<vmem>>, vector<51x1xf32>
    %136 = vector.shape_cast %135 : vector<51x1xf32> to vector<51x1xf32>
    %137 = vector.broadcast %136 : vector<51x1xf32> to vector<51x128xf32>
    %138 = vector.broadcast %15 : vector<1x128xf32> to vector<51x128xf32>
    %139 = arith.cmpf oeq, %138, %137 : vector<51x128xf32>
    %cst_41 = arith.constant 0.000000e+00 : f32
    %140 = vector.shape_cast %111 : vector<1x128xf32> to vector<1x128xf32>
    %141 = vector.broadcast %140 : vector<1x128xf32> to vector<51x128xf32>
    %142 = vector.broadcast %cst_41 : f32 to vector<51x128xf32>
    %143 = arith.select %139, %141, %142 : vector<51x128xi1>, vector<51x128xf32>
    %144 = vector.broadcast %27 : vector<1x128xf32> to vector<51x128xf32>
    %145 = arith.cmpf oeq, %144, %137 : vector<51x128xf32>
    %146 = vector.shape_cast %125 : vector<1x128xf32> to vector<1x128xf32>
    %147 = vector.broadcast %146 : vector<1x128xf32> to vector<51x128xf32>
    %148 = arith.select %145, %147, %143 : vector<51x128xi1>, vector<51x128xf32>
    %149 = vector.broadcast %39 : vector<1x128xf32> to vector<51x128xf32>
    %150 = arith.cmpf oeq, %149, %137 : vector<51x128xf32>
    %151 = vector.shape_cast %128 : vector<1x128xf32> to vector<1x128xf32>
    %152 = vector.broadcast %151 : vector<1x128xf32> to vector<51x128xf32>
    %153 = arith.select %150, %152, %148 : vector<51x128xi1>, vector<51x128xf32>
    %154 = vector.broadcast %51 : vector<1x128xf32> to vector<51x128xf32>
    %155 = arith.cmpf oeq, %154, %137 : vector<51x128xf32>
    %156 = vector.shape_cast %131 : vector<1x128xf32> to vector<1x128xf32>
    %157 = vector.broadcast %156 : vector<1x128xf32> to vector<51x128xf32>
    %158 = arith.select %155, %157, %153 : vector<51x128xi1>, vector<51x128xf32>
    %159 = vector.broadcast %63 : vector<1x128xf32> to vector<51x128xf32>
    %160 = arith.cmpf oeq, %159, %137 : vector<51x128xf32>
    %161 = vector.shape_cast %134 : vector<1x128xf32> to vector<1x128xf32>
    %162 = vector.broadcast %161 : vector<1x128xf32> to vector<51x128xf32>
    %163 = arith.select %160, %162, %158 : vector<51x128xi1>, vector<51x128xf32>
    %c0_42 = arith.constant 0 : index
    %c0_43 = arith.constant 0 : index
    %164 = vector.load %arg4[%c0_42, %c0_43] : memref<51x128xf32, #tpu.memory_space<vmem>>, vector<51x128xf32>
    tpu.vector_store %arg4[%c0_42, %c0_43], %163 {strides = array<i32>} : memref<51x128xf32, #tpu.memory_space<vmem>>, vector<51x128xf32>,
    return
  }
  func.func @transform_0(%arg0: i32) -> (i32, i32) {
    %c0_i32 = arith.constant 0 : i32
    %c0_i32_0 = arith.constant 0 : i32
    %c0_i32_1 = arith.constant 0 : i32
    return %c0_i32, %c0_i32_0 : i32, i32
  }
  func.func @transform_1(%arg0: i32) -> (i32, i32) {
    %c0_i32 = arith.constant 0 : i32
    %c0_i32_0 = arith.constant 0 : i32
    %c0_i32_1 = arith.constant 0 : i32
    return %c0_i32, %c0_i32_0 : i32, i32
  }
  func.func @transform_2(%arg0: i32) -> (i32, i32) {
    %c0_i32 = arith.constant 0 : i32
    %c0_i32_0 = arith.constant 0 : i32
    return %c0_i32, %arg0 : i32, i32
  }
  func.func @transform_3(%arg0: i32) -> (i32, i32) {
    %c0_i32 = arith.constant 0 : i32
    %c0_i32_0 = arith.constant 0 : i32
    return %c0_i32, %arg0 : i32, i32
  }
}

</mosaic_0001>

<llo_original>
// kernel: tpu_custom_call.1
$region0: #{tpu_custom_call.1}
  #allocation0 [shape = 'u32[]', space=smem, size = 0x4, offset = 0x4, fixed_abs, tag = 'smem constant byte address 0x4 - core index']
  #allocation1 [shape = 'u32[144,128]{1,0:T(1,128)}', space=vmem, size = 0x12000, scoped, tag = 'internal scratch']
  %s0 = inlined_call_operand.vmem [shape: f32[51,1], index: 0, kind: input, shape index: {}]
  %s1 = inlined_call_operand.vmem [shape: f32[51,1], index: 1, kind: input, shape index: {}]
  %s2 = inlined_call_operand.vmem [shape: f32[51,128], index: 2, kind: input, shape index: {}]
  %s3 = inlined_call_operand.hbm [shape: f32[51,128], index: 3, kind: output, shape index: {}]
  %s4 = sld [smem:[#allocation0]]
  $region22: #{tpu_custom_call.1} parent=0
    _
  %s6 = ssub.s32 1, %s4
  %s7 = scalar_select 0, %s6, %s4
  $region1: #{tpu_custom_call.1} parent=0
    #allocation2 [shape = 'u8[28672]{0}', space=vmem, size = 0x7000, scoped, tag = 'output window, operand 0, single buffered']
    #allocation3 [shape = 's32[1]{0}', space=sflag, size = 0x4, scoped, tag = 'scoped memory for tpu_custom_call.1']
    %8 = vsyncpa [#allocation3], 0
    // Predicated region
    $region2: #{tpu_custom_call.1} parent=1 // pred_check
      _
    $region3: #{tpu_custom_call.1} parent=1 // pred_check_branch
      %10 = sbr.rel (0) target = $region5
    $region4: #{tpu_custom_call.1} parent=1 // pred_region
      _
    $region5: #{tpu_custom_call.1} parent=1 // pred_fallthru
      _
    // Predicated region
    $region6: #{tpu_custom_call.1} parent=1 // pred_check
      _
    $region7: #{tpu_custom_call.1} parent=1 // pred_check_branch
      %12 = sbr.rel (0) target = $region9
    $region8: #{tpu_custom_call.1} parent=1 // pred_region
      _
    $region9: #{tpu_custom_call.1} parent=1 // pred_fallthru
      _
    // Predicated region
    $region10: #{tpu_custom_call.1} parent=1 // pred_check
      _
    $region11: #{tpu_custom_call.1} parent=1 // pred_check_branch
      %14 = sbr.rel (0) target = $region13
    $region12: #{tpu_custom_call.1} parent=1 // pred_region
      _
    $region13: #{tpu_custom_call.1} parent=1 // pred_fallthru
      _
    %v15 = vld [vmem:[%s2] sm:$0xff]
    %v16 = vld [vmem:[%s2 + $0x8] sm:$0xff]
    %v17 = vld [vmem:[%s2 + $0x10] sm:$0xff]
    %v18 = vld [vmem:[%s2 + $0x18] sm:$0xff]
    %v19 = vld [vmem:[%s2 + $0x20] sm:$0xff]
    %v20 = vld [vmem:[%s2 + $0x28] sm:$0xff]
    %v21 = vld [vmem:[%s2 + $0x30] sm:$0x7]
    %v22 = vld [vmem:[%s0] sm:$0xff]
    %v23 = vld [vmem:[%s0 + $0x8] sm:$0xff]
    %v24 = vld [vmem:[%s0 + $0x10] sm:$0xff]
    %v25 = vld [vmem:[%s0 + $0x18] sm:$0xff]
    %v26 = vld [vmem:[%s0 + $0x20] sm:$0xff]
    %v27 = vld [vmem:[%s0 + $0x28] sm:$0xff]
    %v28 = vld [vmem:[%s0 + $0x30] sm:$0x7]
    %30 = vset.pattern.permute.xlu0 0
    %31 = vperm.xlu0 %30, %v22
    %v32 = vpop.permute.xlu0 %31
    %35 = vset.pattern.permute.xlu0 0
    %36 = vperm.xlu0 %35, %v23
    %v37 = vpop.permute.xlu0 %36
    %40 = vset.pattern.permute.xlu0 0
    %41 = vperm.xlu0 %40, %v24
    %v42 = vpop.permute.xlu0 %41
    %45 = vset.pattern.permute.xlu0 0
    %46 = vperm.xlu0 %45, %v25
    %v47 = vpop.permute.xlu0 %46
    %50 = vset.pattern.permute.xlu0 0
    %51 = vperm.xlu0 %50, %v26
    %v52 = vpop.permute.xlu0 %51
    %55 = vset.pattern.permute.xlu0 0
    %56 = vperm.xlu0 %55, %v27
    %v57 = vpop.permute.xlu0 %56
    %60 = vset.pattern.permute.xlu0 0
    %61 = vperm.xlu0 %60, %v28
    %v62 = vpop.permute.xlu0 %61
    %vm64 = vcmp.lt.f32.partialorder %v32, 64.0
    %vm65 = vcmp.lt.f32.partialorder %v37, 64.0
    %vm66 = vcmp.lt.f32.partialorder %v42, 64.0
    %vm67 = vcmp.lt.f32.partialorder %v47, 64.0
    %vm68 = vcmp.lt.f32.partialorder %v52, 64.0
    %vm69 = vcmp.lt.f32.partialorder %v57, 64.0
    %vm70 = vcmp.lt.f32.partialorder %v62, 64.0
    %v71 = vsel %vm64, -100.0, %v15
    %v72 = vsel %vm65, -100.0, %v16
    %v73 = vsel %vm66, -100.0, %v17
    %v74 = vsel %vm67, -100.0, %v18
    %v75 = vsel %vm68, -100.0, %v19
    %v76 = vsel %vm69, -100.0, %v20
    %v77 = vsel %vm70, -100.0, %v21
    %v78 = vmax.f32 %v71, %v75
    %v79 = vmax.f32 %v72, %v76
    %vm80 = vcmask 1042432
    %v81 = vsel %vm80, %v77, -inf
    %v82 = vmax.f32 %v73, %v81
    %v83 = vmax.f32 %v78, %v79
    %v84 = vmax.f32 %v82, %v74
    %v85 = vmax.f32 %v83, %v84
    %v86 = vrot.slane %v85, 4
    %v87 = vmax.f32 %v85, %v86
    %v88 = vrot.slane %v87, 2
    %v89 = vmax.f32 %v87, %v88
    %v90 = vrot.slane %v89, 1
    %v91 = vmax.f32 %v89, %v90
    %vm92 = vcmp.eq.f32.partialorder %v71, %v91
    %vm93 = vcmp.eq.f32.partialorder %v72, %v91
    %vm94 = vcmp.eq.f32.partialorder %v73, %v91
    %vm95 = vcmp.eq.f32.partialorder %v74, %v91
    %vm96 = vcmp.eq.f32.partialorder %v75, %v91
    %vm97 = vcmp.eq.f32.partialorder %v76, %v91
    %vm98 = vcmp.eq.f32.partialorder %v77, %v91
    %v99 = vsel %vm92, %v32, 65536.0
    %v100 = vsel %vm93, %v37, 65536.0
    %v101 = vsel %vm94, %v42, 65536.0
    %v102 = vsel %vm95, %v47, 65536.0
    %v103 = vsel %vm96, %v52, 65536.0
    %v104 = vsel %vm97, %v57, 65536.0
    %v105 = vsel %vm98, %v62, 65536.0
    %v106 = vmin.f32 %v99, %v103
    %v107 = vmin.f32 %v100, %v104
    %v108 = vsel %vm80, %v105, inf
    %v109 = vmin.f32 %v101, %v108
    %v110 = vmin.f32 %v106, %v107
    %v111 = vmin.f32 %v109, %v102
    %v112 = vmin.f32 %v110, %v111
    %v113 = vrot.slane %v112, 4
    %v114 = vmin.f32 %v112, %v113
    %v115 = vrot.slane %v114, 2
    %v116 = vmin.f32 %v114, %v115
    %v117 = vrot.slane %v116, 1
    %v118 = vmin.f32 %v116, %v117
    %vm119 = vcmp.eq.f32.partialorder %v99, %v118
    %vm120 = vcmp.eq.f32.partialorder %v100, %v118
    %vm121 = vcmp.eq.f32.partialorder %v101, %v118
    %vm122 = vcmp.eq.f32.partialorder %v102, %v118
    %vm123 = vcmp.eq.f32.partialorder %v103, %v118
    %vm124 = vcmp.eq.f32.partialorder %v104, %v118
    %vm125 = vcmp.eq.f32.partialorder %v105, %v118
    %v126 = vsel %vm119, -1e+30, %v71
    %v127 = vsel %vm120, -1e+30, %v72
    %v128 = vsel %vm121, -1e+30, %v73
    %v129 = vsel %vm122, -1e+30, %v74
    %v130 = vsel %vm123, -1e+30, %v75
    %v131 = vsel %vm124, -1e+30, %v76
    %v132 = vsel %vm125, -1e+30, %v77
    %v133 = vmax.f32 %v126, %v130
    %v134 = vmax.f32 %v127, %v131
    %v135 = vsel %vm80, %v132, -inf
    %v136 = vmax.f32 %v128, %v135
    %v137 = vmax.f32 %v133, %v134
    %v138 = vmax.f32 %v136, %v129
    %v139 = vmax.f32 %v137, %v138
    %v140 = vrot.slane %v139, 4
    %v141 = vmax.f32 %v139, %v140
    %v142 = vrot.slane %v141, 2
    %v143 = vmax.f32 %v141, %v142
    %v144 = vrot.slane %v143, 1
    %v145 = vmax.f32 %v143, %v144
    %vm146 = vcmp.eq.f32.partialorder %v126, %v145
    %vm147 = vcmp.eq.f32.partialorder %v127, %v145
    %vm148 = vcmp.eq.f32.partialorder %v128, %v145
    %vm149 = vcmp.eq.f32.partialorder %v129, %v145
    %vm150 = vcmp.eq.f32.partialorder %v130, %v145
    %vm151 = vcmp.eq.f32.partialorder %v131, %v145
    %vm152 = vcmp.eq.f32.partialorder %v132, %v145
    %v153 = vsel %vm146, %v32, 65536.0
    %v154 = vsel %vm147, %v37, 65536.0
    %v155 = vsel %vm148, %v42, 65536.0
    %v156 = vsel %vm149, %v47, 65536.0
    %v157 = vsel %vm150, %v52, 65536.0
    %v158 = vsel %vm151, %v57, 65536.0
    %v159 = vsel %vm152, %v62, 65536.0
    %v160 = vmin.f32 %v153, %v157
    %v161 = vmin.f32 %v154, %v158
    %v162 = vsel %vm80, %v159, inf
    %v163 = vmin.f32 %v155, %v162
    %v164 = vmin.f32 %v160, %v161
    %v165 = vmin.f32 %v163, %v156
    %v166 = vmin.f32 %v164, %v165
    %v167 = vrot.slane %v166, 4
    %v168 = vmin.f32 %v166, %v167
    %v169 = vrot.slane %v168, 2
    %v170 = vmin.f32 %v168, %v169
    %v171 = vrot.slane %v170, 1
    %v172 = vmin.f32 %v170, %v171
    %vm173 = vcmp.eq.f32.partialorder %v153, %v172
    %vm174 = vcmp.eq.f32.partialorder %v154, %v172
    %vm175 = vcmp.eq.f32.partialorder %v155, %v172
    %vm176 = vcmp.eq.f32.partialorder %v156, %v172
    %vm177 = vcmp.eq.f32.partialorder %v157, %v172
    %vm178 = vcmp.eq.f32.partialorder %v158, %v172
    %vm179 = vcmp.eq.f32.partialorder %v159, %v172
    %v180 = vsel %vm173, -1e+30, %v126
    %v181 = vsel %vm174, -1e+30, %v127
    %v182 = vsel %vm175, -1e+30, %v128
    %v183 = vsel %vm176, -1e+30, %v129
    %v184 = vsel %vm177, -1e+30, %v130
    %v185 = vsel %vm178, -1e+30, %v131
    %v186 = vsel %vm179, -1e+30, %v132
    %v187 = vmax.f32 %v180, %v184
    %v188 = vmax.f32 %v181, %v185
    %v189 = vsel %vm80, %v186, -inf
    %v190 = vmax.f32 %v182, %v189
    %v191 = vmax.f32 %v187, %v188
    %v192 = vmax.f32 %v190, %v183
    %v193 = vmax.f32 %v191, %v192
    %v194 = vrot.slane %v193, 4
    %v195 = vmax.f32 %v193, %v194
    %v196 = vrot.slane %v195, 2
    %v197 = vmax.f32 %v195, %v196
    %v198 = vrot.slane %v197, 1
    %v199 = vmax.f32 %v197, %v198
    %vm200 = vcmp.eq.f32.partialorder %v180, %v199
    %vm201 = vcmp.eq.f32.partialorder %v181, %v199
    %vm202 = vcmp.eq.f32.partialorder %v182, %v199
    %vm203 = vcmp.eq.f32.partialorder %v183, %v199
    %vm204 = vcmp.eq.f32.partialorder %v184, %v199
    %vm205 = vcmp.eq.f32.partialorder %v185, %v199
    %vm206 = vcmp.eq.f32.partialorder %v186, %v199
    %v207 = vsel %vm200, %v32, 65536.0
    %v208 = vsel %vm201, %v37, 65536.0
    %v209 = vsel %vm202, %v42, 65536.0
    %v210 = vsel %vm203, %v47, 65536.0
    %v211 = vsel %vm204, %v52, 65536.0
    %v212 = vsel %vm205, %v57, 65536.0
    %v213 = vsel %vm206, %v62, 65536.0
    %v214 = vmin.f32 %v207, %v211
    %v215 = vmin.f32 %v208, %v212
    %v216 = vsel %vm80, %v213, inf
    %v217 = vmin.f32 %v209, %v216
    %v218 = vmin.f32 %v214, %v215
    %v219 = vmin.f32 %v217, %v210
    %v220 = vmin.f32 %v218, %v219
    %v221 = vrot.slane %v220, 4
    %v222 = vmin.f32 %v220, %v221
    %v223 = vrot.slane %v222, 2
    %v224 = vmin.f32 %v222, %v223
    %v225 = vrot.slane %v224, 1
    %v226 = vmin.f32 %v224, %v225
    %vm227 = vcmp.eq.f32.partialorder %v207, %v226
    %vm228 = vcmp.eq.f32.partialorder %v208, %v226
    %vm229 = vcmp.eq.f32.partialorder %v209, %v226
    %vm230 = vcmp.eq.f32.partialorder %v210, %v226
    %vm231 = vcmp.eq.f32.partialorder %v211, %v226
    %vm232 = vcmp.eq.f32.partialorder %v212, %v226
    %vm233 = vcmp.eq.f32.partialorder %v213, %v226
    %v234 = vsel %vm227, -1e+30, %v180
    %v235 = vsel %vm228, -1e+30, %v181
    %v236 = vsel %vm229, -1e+30, %v182
    %v237 = vsel %vm230, -1e+30, %v183
    %v238 = vsel %vm231, -1e+30, %v184
    %v239 = vsel %vm232, -1e+30, %v185
    %v240 = vsel %vm233, -1e+30, %v186
    %v241 = vmax.f32 %v234, %v238
    %v242 = vmax.f32 %v235, %v239
    %v243 = vsel %vm80, %v240, -inf
    %v244 = vmax.f32 %v236, %v243
    %v245 = vmax.f32 %v241, %v242
    %v246 = vmax.f32 %v244, %v237
    %v247 = vmax.f32 %v245, %v246
    %v248 = vrot.slane %v247, 4
    %v249 = vmax.f32 %v247, %v248
    %v250 = vrot.slane %v249, 2
    %v251 = vmax.f32 %v249, %v250
    %v252 = vrot.slane %v251, 1
    %v253 = vmax.f32 %v251, %v252
    %vm254 = vcmp.eq.f32.partialorder %v234, %v253
    %vm255 = vcmp.eq.f32.partialorder %v235, %v253
    %vm256 = vcmp.eq.f32.partialorder %v236, %v253
    %vm257 = vcmp.eq.f32.partialorder %v237, %v253
    %vm258 = vcmp.eq.f32.partialorder %v238, %v253
    %vm259 = vcmp.eq.f32.partialorder %v239, %v253
    %vm260 = vcmp.eq.f32.partialorder %v240, %v253
    %v261 = vsel %vm254, %v32, 65536.0
    %v262 = vsel %vm255, %v37, 65536.0
    %v263 = vsel %vm256, %v42, 65536.0
    %v264 = vsel %vm257, %v47, 65536.0
    %v265 = vsel %vm258, %v52, 65536.0
    %v266 = vsel %vm259, %v57, 65536.0
    %v267 = vsel %vm260, %v62, 65536.0
    %v268 = vmin.f32 %v261, %v265
    %v269 = vmin.f32 %v262, %v266
    %v270 = vsel %vm80, %v267, inf
    %v271 = vmin.f32 %v263, %v270
    %v272 = vmin.f32 %v268, %v269
    %v273 = vmin.f32 %v271, %v264
    %v274 = vmin.f32 %v272, %v273
    %v275 = vrot.slane %v274, 4
    %v276 = vmin.f32 %v274, %v275
    %v277 = vrot.slane %v276, 2
    %v278 = vmin.f32 %v276, %v277
    %v279 = vrot.slane %v278, 1
    %v280 = vmin.f32 %v278, %v279
    %vm281 = vcmp.eq.f32.partialorder %v261, %v280
    %vm282 = vcmp.eq.f32.partialorder %v262, %v280
    %vm283 = vcmp.eq.f32.partialorder %v263, %v280
    %vm284 = vcmp.eq.f32.partialorder %v264, %v280
    %vm285 = vcmp.eq.f32.partialorder %v265, %v280
    %vm286 = vcmp.eq.f32.partialorder %v266, %v280
    %vm287 = vcmp.eq.f32.partialorder %v267, %v280
    %v288 = vsel %vm281, -1e+30, %v234
    %v289 = vsel %vm282, -1e+30, %v235
    %v290 = vsel %vm283, -1e+30, %v236
    %v291 = vsel %vm284, -1e+30, %v237
    %v292 = vsel %vm285, -1e+30, %v238
    %v293 = vsel %vm286, -1e+30, %v239
    %v294 = vsel %vm287, -1e+30, %v240
    %v295 = vmax.f32 %v288, %v292
    %v296 = vmax.f32 %v289, %v293
    %v297 = vsel %vm80, %v294, -inf
    %v298 = vmax.f32 %v290, %v297
    %v299 = vmax.f32 %v295, %v296
    %v300 = vmax.f32 %v298, %v291
    %v301 = vmax.f32 %v299, %v300
    %v302 = vrot.slane %v301, 4
    %v303 = vmax.f32 %v301, %v302
    %v304 = vrot.slane %v303, 2
    %v305 = vmax.f32 %v303, %v304
    %v306 = vrot.slane %v305, 1
    %v307 = vmax.f32 %v305, %v306
    %vm308 = vcmp.eq.f32.partialorder %v288, %v307
    %vm309 = vcmp.eq.f32.partialorder %v289, %v307
    %vm310 = vcmp.eq.f32.partialorder %v290, %v307
    %vm311 = vcmp.eq.f32.partialorder %v291, %v307
    %vm312 = vcmp.eq.f32.partialorder %v292, %v307
    %vm313 = vcmp.eq.f32.partialorder %v293, %v307
    %vm314 = vcmp.eq.f32.partialorder %v294, %v307
    %v315 = vsel %vm308, %v32, 65536.0
    %v316 = vsel %vm309, %v37, 65536.0
    %v317 = vsel %vm310, %v42, 65536.0
    %v318 = vsel %vm311, %v47, 65536.0
    %v319 = vsel %vm312, %v52, 65536.0
    %v320 = vsel %vm313, %v57, 65536.0
    %v321 = vsel %vm314, %v62, 65536.0
    %v322 = vmin.f32 %v315, %v319
    %v323 = vmin.f32 %v316, %v320
    %v324 = vsel %vm80, %v321, inf
    %v325 = vmin.f32 %v317, %v324
    %v326 = vmin.f32 %v322, %v323
    %v327 = vmin.f32 %v325, %v318
    %v328 = vmin.f32 %v326, %v327
    %v329 = vrot.slane %v328, 4
    %v330 = vmin.f32 %v328, %v329
    %v331 = vrot.slane %v330, 2
    %v332 = vmin.f32 %v330, %v331
    %v333 = vrot.slane %v332, 1
    %v334 = vmin.f32 %v332, %v333
    %v335 = vmul.f32 %v118, 0.015625
    %v336 = vfloor.f32 %v335
    %v337 = vmul.f32 %v336, 64.0
    %v338 = vsub.f32 %v118, %v337
    %v339 = vmul.f32 %v172, 0.015625
    %v340 = vfloor.f32 %v339
    %v341 = vmul.f32 %v340, 64.0
    %v342 = vsub.f32 %v172, %v341
    %v343 = vmul.f32 %v226, 0.015625
    %v344 = vfloor.f32 %v343
    %v345 = vmul.f32 %v344, 64.0
    %v346 = vsub.f32 %v226, %v345
    %v347 = vmul.f32 %v280, 0.015625
    %v348 = vfloor.f32 %v347
    %v349 = vmul.f32 %v348, 64.0
    %v350 = vsub.f32 %v280, %v349
    %v351 = vmul.f32 %v334, 0.015625
    %v352 = vfloor.f32 %v351
    %v353 = vmul.f32 %v352, 64.0
    %v354 = vsub.f32 %v334, %v353
    %v355 = vrcp.pop %v91
    %v356 = vmul.f32 %v145, %v355
    %v357 = vmul.f32 %v199, %v355
    %v358 = vmul.f32 %v253, %v355
    %v359 = vmul.f32 %v307, %v355
    %v360 = vrcp.pop %v145
    %v361 = vmul.f32 %v91, %v360
    %v362 = vrcp.pop %v199
    %v363 = vmul.f32 %v91, %v362
    %v364 = vrcp.pop %v253
    %v365 = vmul.f32 %v91, %v364
    %v366 = vrcp.pop %v307
    %v367 = vmul.f32 %v91, %v366
    %v368 = vmax.f32 %v338, %v342
    %vm369 = vcmp.ge.f32.partialorder %v338, %v368
    %v370 = vsel %vm369, 1.0, 0.0
    %vm371 = vcmp.ge.f32.partialorder %v342, %v368
    %v372 = vsel %vm371, %v361, 0.0
    %v373 = vmax.f32 %v368, %v346
    %vm374 = vcmp.ge.f32.partialorder %v346, %v373
    %v375 = vsel %vm374, %v363, 0.0
    %v376 = vmax.f32 %v373, %v350
    %vm377 = vcmp.ge.f32.partialorder %v350, %v376
    %v378 = vsel %vm377, %v365, 0.0
    %v379 = vmax.f32 %v376, %v354
    %vm380 = vcmp.ge.f32.partialorder %v354, %v379
    %v381 = vsel %vm380, %v367, 0.0
    %vm382 = vcmp.lt.f32.partialorder %v356, 0.3
    %v383 = vsel %vm382, 0.0, %v372
    %vm384 = vcmp.lt.f32.partialorder %v357, 0.3
    %v385 = vsel %vm384, 0.0, %v375
    %vm386 = vcmp.lt.f32.partialorder %v358, 0.3
    %v387 = vsel %vm386, 0.0, %v378
    %vm388 = vcmp.lt.f32.partialorder %v359, 0.3
    %v389 = vsel %vm388, 0.0, %v381
    %v390 = vld [vmem:[%s1] sm:$0xff]
    %v391 = vld [vmem:[%s1 + $0x8] sm:$0xff]
    %v392 = vld [vmem:[%s1 + $0x10] sm:$0xff]
    %v393 = vld [vmem:[%s1 + $0x18] sm:$0xff]
    %v394 = vld [vmem:[%s1 + $0x20] sm:$0xff]
    %v395 = vld [vmem:[%s1 + $0x28] sm:$0xff]
    %v396 = vld [vmem:[%s1 + $0x30] sm:$0x7]
    %398 = vset.pattern.permute.xlu0 0
    %399 = vperm.xlu0 %398, %v390
    %v400 = vpop.permute.xlu0 %399
    %403 = vset.pattern.permute.xlu0 0
    %404 = vperm.xlu0 %403, %v391
    %v405 = vpop.permute.xlu0 %404
    %408 = vset.pattern.permute.xlu0 0
    %409 = vperm.xlu0 %408, %v392
    %v410 = vpop.permute.xlu0 %409
    %413 = vset.pattern.permute.xlu0 0
    %414 = vperm.xlu0 %413, %v393
    %v415 = vpop.permute.xlu0 %414
    %418 = vset.pattern.permute.xlu0 0
    %419 = vperm.xlu0 %418, %v394
    %v420 = vpop.permute.xlu0 %419
    %423 = vset.pattern.permute.xlu0 0
    %424 = vperm.xlu0 %423, %v395
    %v425 = vpop.permute.xlu0 %424
    %428 = vset.pattern.permute.xlu0 0
    %429 = vperm.xlu0 %428, %v396
    %v430 = vpop.permute.xlu0 %429
    %vm432 = vcmp.eq.f32.partialorder %v118, %v400
    %vm433 = vcmp.eq.f32.partialorder %v118, %v405
    %vm434 = vcmp.eq.f32.partialorder %v118, %v410
    %vm435 = vcmp.eq.f32.partialorder %v118, %v415
    %vm436 = vcmp.eq.f32.partialorder %v118, %v420
    %vm437 = vcmp.eq.f32.partialorder %v118, %v425
    %vm438 = vcmp.eq.f32.partialorder %v118, %v430
    %v439 = vsel %vm432, %v370, 0.0
    %v440 = vsel %vm433, %v370, 0.0
    %v441 = vsel %vm434, %v370, 0.0
    %v442 = vsel %vm435, %v370, 0.0
    %v443 = vsel %vm436, %v370, 0.0
    %v444 = vsel %vm437, %v370, 0.0
    %v445 = vsel %vm438, %v370, 0.0
    %vm446 = vcmp.eq.f32.partialorder %v172, %v400
    %vm447 = vcmp.eq.f32.partialorder %v172, %v405
    %vm448 = vcmp.eq.f32.partialorder %v172, %v410
    %vm449 = vcmp.eq.f32.partialorder %v172, %v415
    %vm450 = vcmp.eq.f32.partialorder %v172, %v420
    %vm451 = vcmp.eq.f32.partialorder %v172, %v425
    %vm452 = vcmp.eq.f32.partialorder %v172, %v430
    %v453 = vsel %vm446, %v383, %v439
    %v454 = vsel %vm447, %v383, %v440
    %v455 = vsel %vm448, %v383, %v441
    %v456 = vsel %vm449, %v383, %v442
    %v457 = vsel %vm450, %v383, %v443
    %v458 = vsel %vm451, %v383, %v444
    %v459 = vsel %vm452, %v383, %v445
    %vm460 = vcmp.eq.f32.partialorder %v226, %v400
    %vm461 = vcmp.eq.f32.partialorder %v226, %v405
    %vm462 = vcmp.eq.f32.partialorder %v226, %v410
    %vm463 = vcmp.eq.f32.partialorder %v226, %v415
    %vm464 = vcmp.eq.f32.partialorder %v226, %v420
    %vm465 = vcmp.eq.f32.partialorder %v226, %v425
    %vm466 = vcmp.eq.f32.partialorder %v226, %v430
    %v467 = vsel %vm460, %v385, %v453
    %v468 = vsel %vm461, %v385, %v454
    %v469 = vsel %vm462, %v385, %v455
    %v470 = vsel %vm463, %v385, %v456
    %v471 = vsel %vm464, %v385, %v457
    %v472 = vsel %vm465, %v385, %v458
    %v473 = vsel %vm466, %v385, %v459
    %vm474 = vcmp.eq.f32.partialorder %v280, %v400
    %vm475 = vcmp.eq.f32.partialorder %v280, %v405
    %vm476 = vcmp.eq.f32.partialorder %v280, %v410
    %vm477 = vcmp.eq.f32.partialorder %v280, %v415
    %vm478 = vcmp.eq.f32.partialorder %v280, %v420
    %vm479 = vcmp.eq.f32.partialorder %v280, %v425
    %vm480 = vcmp.eq.f32.partialorder %v280, %v430
    %v481 = vsel %vm474, %v387, %v467
    %v482 = vsel %vm475, %v387, %v468
    %v483 = vsel %vm476, %v387, %v469
    %v484 = vsel %vm477, %v387, %v470
    %v485 = vsel %vm478, %v387, %v471
    %v486 = vsel %vm479, %v387, %v472
    %v487 = vsel %vm480, %v387, %v473
    %vm488 = vcmp.eq.f32.partialorder %v334, %v400
    %vm489 = vcmp.eq.f32.partialorder %v334, %v405
    %vm490 = vcmp.eq.f32.partialorder %v334, %v410
    %vm491 = vcmp.eq.f32.partialorder %v334, %v415
    %vm492 = vcmp.eq.f32.partialorder %v334, %v420
    %vm493 = vcmp.eq.f32.partialorder %v334, %v425
    %vm494 = vcmp.eq.f32.partialorder %v334, %v430
    %v495 = vsel %vm488, %v389, %v481
    %v496 = vsel %vm489, %v389, %v482
    %v497 = vsel %vm490, %v389, %v483
    %v498 = vsel %vm491, %v389, %v484
    %v499 = vsel %vm492, %v389, %v485
    %v500 = vsel %vm493, %v389, %v486
    %v501 = vsel %vm494, %v389, %v487
    %502 = vst [vmem:[#allocation2] sm:$0xff] %v495
    %503 = vst [vmem:[#allocation2 + $0x8] sm:$0xff] %v496
    %504 = vst [vmem:[#allocation2 + $0x10] sm:$0xff] %v497
    %505 = vst [vmem:[#allocation2 + $0x18] sm:$0xff] %v498
    %506 = vst [vmem:[#allocation2 + $0x20] sm:$0xff] %v499
    %507 = vst [vmem:[#allocation2 + $0x28] sm:$0xff] %v500
    %508 = vst [vmem:[#allocation2 + $0x30] sm:$0x7] %v501
    // Predicated region
    $region14: #{tpu_custom_call.1} parent=1 // pred_check
      _
    $region15: #{tpu_custom_call.1} parent=1 // pred_check_branch
      %510 = sbr.rel (0) target = $region17
    $region16: #{tpu_custom_call.1} parent=1 // pred_region
      %s512 = ssub.s32 896, 896
      %513 = vsyncadd [#allocation3], %s512
      %s514 = sshll.u32 [#allocation2], 4
      %s515 = int_to_ptr.vmem [resolvable:$true] %s514
      %520 = dma.vmem_to_hbm [thread:$0]  %s515, 896, %s3, [#allocation3], 128, 128, 8
    $region17: #{tpu_custom_call.1} parent=1 // pred_fallthru
      _
    // Predicated region
    $region18: #{tpu_custom_call.1} parent=1 // pred_check
      _
    $region19: #{tpu_custom_call.1} parent=1 // pred_check_branch
      %522 = sbr.rel (0) target = $region21
    $region20: #{tpu_custom_call.1} parent=1 // pred_region
      %523 = dma.done [#allocation3], 896
    $region21: #{tpu_custom_call.1} parent=1 // pred_fallthru
      _
    %524 = vsyncpa [#allocation3], 1

</llo_original>
